<compile_context>
chip_gen: v7x
topology: tpu7x:2x2x1
jax: 0.10.0
libtpu: 0.0.40
codegen_flags: <defaults>
</compile_context>

<pallas_src>
import functools

import jax
import jax.numpy as jnp
from jax import lax
from jax.experimental import pallas as pl
from jax.experimental.pallas import tpu as pltpu

INV_SQRT2 = 2.0 ** -0.5


def _gated_core(window, seq_ref, b_ref, w_taps_ref, w_seq_ref, w_rs_ref,
                res_ref, skip_ref, *, kernels: int, dilation: int, cdtype):
    """Shared compute: split-K dilated conv + seq 1x1 + gating + res/skip projections.

    window(off, size) -> [C, size] slice of the (halo-extended) conv input.
    """
    _, C, TT = res_ref.shape
    # seq 1x1 conv first (independent of x -> MXU can start immediately).
    acc = jnp.dot(w_seq_ref[...], seq_ref[0], preferred_element_type=jnp.float32)
    # K dilated taps accumulated directly (no stacked-RHS store/reload round trip).
    for k in range(kernels):                       # static unroll, K is small
        acc = acc + jnp.dot(w_taps_ref[k], window(k * dilation, TT),
                            preferred_element_type=jnp.float32)
    acc = acc + b_ref[...]                         # [2C, TT] f32

    gate, context = acc[:C], acc[C:]
    # sigmoid(g) == 0.5*tanh(0.5*g)+0.5 -> one EUP op per element instead of exp+recip.
    h = (0.5 * jnp.tanh(0.5 * gate) + 0.5) * jnp.tanh(context)      # [C, TT] f32

    # res/skip share a single [2C, C] @ [C, TT] matmul.  The residual identity is
    # kept as an f32 add of h (not folded into a low-precision weight); the 2^-0.5
    # scale is folded into the res half of w_rs.
    y = jnp.dot(w_rs_ref[...], h.astype(cdtype), preferred_element_type=jnp.float32)
    res_ref[0] = (h * INV_SQRT2 + y[:C]).astype(res_ref.dtype)
    skip_ref[0] = y[C:].astype(skip_ref.dtype)


def wavenet_block_kernel(x_ref, halo_ref, seq_ref, b_ref, w_taps_ref, w_seq_ref,
                         w_rs_ref, res_ref, skip_ref, xwin_ref,
                         *, kernels: int, dilation: int, cdtype):
    """One (batch, time-tile) step.  x_ref: [1,C,TT] tile, halo_ref: [1,1,C,2*pad]."""
    TT = res_ref.shape[2]
    # Assemble the [C, TT + 2*pad] conv window from the auto-pipelined tile plus the
    # tiny (un-rounded) halo slab; both arrived via the pipeline, DMA fully hidden.
    xwin_ref[:, :TT] = x_ref[0]
    xwin_ref[:, TT:] = halo_ref[0, 0]
    _gated_core(lambda off, size: xwin_ref[:, off:off + size],
                seq_ref, b_ref, w_taps_ref, w_seq_ref, w_rs_ref, res_ref, skip_ref,
                kernels=kernels, dilation=dilation, cdtype=cdtype)


def wavenet_block_kernel_nohalo(x_ref, seq_ref, b_ref, w_taps_ref, w_seq_ref,
                                w_rs_ref, res_ref, skip_ref,
                                *, kernels: int, dilation: int, cdtype):
    """pad == 0 path (kernels == 1): the conv window is exactly the current tile."""
    _gated_core(lambda off, size: x_ref[0, :, off:off + size],
                seq_ref, b_ref, w_taps_ref, w_seq_ref, w_rs_ref, res_ref, skip_ref,
                kernels=kernels, dilation=dilation, cdtype=cdtype)


def wavenet_block(inputs, embed, seq, params, *, kernels: int, dilations: int,
                  time_tile: int = 1024, compute_dtype=jnp.bfloat16):
    """inputs: [B,C,T], embed: [B,E], seq: [B,S,T] -> (res, skip), each [B,C,T] f32."""
    B, C, T = inputs.shape
    S = seq.shape[1]
    K, D = kernels, dilations
    assert (K - 1) * D % 2 == 0, "asymmetric 'same' padding not supported"
    assert C % 8 == 0, "channels must be a multiple of 8 (sublane granularity)"
    pad = (K - 1) * D // 2
    cdtype = jnp.dtype(compute_dtype)

    # Lane-dense time tiling: TT a multiple of 128, T rounded up to a tile multiple.
    TT = max(128, min(time_tile, pl.cdiv(T, 128) * 128))
    TT = (TT // 128) * 128
    assert 2 * pad <= TT, "conv halo must fit within one time tile"
    T_pad = pl.cdiv(T, TT) * TT
    nT = T_pad // TT

    # Embedding projection hoisted out of the kernel (N=1 matmul is MXU-hostile).
    x = inputs + (embed @ params["w_embed"].T)[:, :, None]                  # [B, C, T]

    # Conv input: left pad by `pad`, right pad to T_pad + 2*pad (covers main tiles
    # plus the last tile's halo).
    xe = jnp.pad(x, ((0, 0), (0, 0), (pad, T_pad + pad - T)))               # [B,C,T_pad+2p]
    x_main = xe[:, :, :T_pad].astype(cdtype)                                # read once/tile
    if pad > 0:
        # Per-tile halo slab [B, nT, C, 2*pad]: the 2*pad columns following each tile.
        t_idx = (TT * (1 + jnp.arange(nT)))[:, None] + jnp.arange(2 * pad)[None, :]
        halo = jnp.transpose(xe[:, :, t_idx], (0, 2, 1, 3)).astype(cdtype)
    seq_p = jnp.pad(seq, ((0, 0), (0, 0), (0, T_pad - T))).astype(cdtype)   # [B, S, T_pad]

    # Effective weights (weight_norm is identity at init).
    w_taps = jnp.transpose(params["w_conv"], (2, 0, 1)).astype(cdtype)      # [K, 2C, C]
    w_seq = params["w_seq"].astype(cdtype)                                  # [2C, S]
    b_conv = params["b_conv"].reshape(2 * C, 1).astype(jnp.float32)         # [2C, 1]
    w_rs = jnp.concatenate([params["w_res"] * (2.0 ** -0.5),
                            params["w_skip"]], axis=0).astype(cdtype)       # [2C, C]

    in_specs = [pl.BlockSpec((1, C, TT), lambda b, t: (b, 0, t))]           # x tile
    args = [x_main]
    if pad > 0:
        in_specs.append(pl.BlockSpec((1, 1, C, 2 * pad), lambda b, t: (b, t, 0, 0)))
        args.append(halo)
    in_specs += [
        pl.BlockSpec((1, S, TT), lambda b, t: (b, 0, t)),                   # seq tile
        pl.BlockSpec((2 * C, 1), lambda b, t: (0, 0)),                      # conv bias
        pl.BlockSpec((K, 2 * C, C), lambda b, t: (0, 0, 0)),                # conv taps
        pl.BlockSpec((2 * C, S), lambda b, t: (0, 0)),                      # seq 1x1 W
        pl.BlockSpec((2 * C, C), lambda b, t: (0, 0)),                      # res/skip W
    ]
    args += [seq_p, b_conv, w_taps, w_seq, w_rs]

    if pad > 0:
        kernel = functools.partial(wavenet_block_kernel, kernels=K, dilation=D,
                                   cdtype=cdtype)
        scratch_shapes = [pltpu.VMEM((C, TT + 2 * pad), cdtype)]            # conv window
    else:
        kernel = functools.partial(wavenet_block_kernel_nohalo, kernels=K, dilation=D,
                                   cdtype=cdtype)
        scratch_shapes = []

    grid_spec = pltpu.PrefetchScalarGridSpec(
        num_scalar_prefetch=0,
        grid=(B, nT),
        in_specs=in_specs,
        out_specs=[pl.BlockSpec((1, C, TT), lambda b, t: (b, 0, t)),        # residual
                   pl.BlockSpec((1, C, TT), lambda b, t: (b, 0, t))],       # skip
        scratch_shapes=scratch_shapes)

    # VMEM budget from the actual footprint (stays well inside v7x's 64 MiB).
    isz = cdtype.itemsize
    vmem_bytes = (2 * isz * (C * TT + C * max(2 * pad, 128) + S * TT)       # 2x-buffered inputs
                  + 2 * 4 * (2 * C * TT)                                    # 2x-buffered f32 outputs
                  + isz * (C * (TT + 2 * pad)                               # window scratch
                           + K * 2 * C * C + 2 * C * S + 2 * C * C)         # weights
                  + 4 * 2 * C)
    vmem_limit = int(min(max(2 * vmem_bytes + (4 << 20), 16 << 20), 64 << 20))

    flops = 2 * B * T_pad * (2 * C) * (K * C + S + C)
    bytes_accessed = int(
        isz * (B * nT * C * (TT + 2 * pad) + B * S * T_pad
               + w_taps.size + w_seq.size + w_rs.size)
        + 4 * (2 * B * C * T_pad + 2 * C))
    cost = pl.CostEstimate(flops=flops, transcendentals=2 * B * C * T_pad,
                           bytes_accessed=bytes_accessed)

    res_p, skip_p = pl.pallas_call(
        kernel,
        out_shape=(jax.ShapeDtypeStruct((B, C, T_pad), jnp.float32),
                   jax.ShapeDtypeStruct((B, C, T_pad), jnp.float32)),
        grid_spec=grid_spec,
        compiler_params=pltpu.CompilerParams(
            dimension_semantics=("parallel", "parallel"),   # megacore sharding on v7x
            vmem_limit_bytes=vmem_limit),
        cost_estimate=cost,
    )(*args)

    return res_p[:, :, :T], skip_p[:, :, :T]


def ref_wavenet_block(inputs, embed, seq, params, *, kernels: int, dilations: int):
    """Pure-JAX f32 reference matching the PyTorch forward."""
    C = inputs.shape[1]
    pad = (kernels - 1) * dilations // 2
    x = inputs + (embed @ params["w_embed"].T)[..., None]
    x = lax.conv_general_dilated(
        x, params["w_conv"], window_strides=(1,), padding=[(pad, pad)],
        rhs_dilation=(dilations,),
        dimension_numbers=("NCH", "OIH", "NCH")) + params["b_conv"][None, :, None]
    x = x + jnp.einsum("os,bst->bot", params["w_seq"], seq)
    gate, context = x[:, :C], x[:, C:]
    h = jax.nn.sigmoid(gate) * jnp.tanh(context)
    res = (h + jnp.einsum("oc,bct->bot", params["w_res"], h)) * (2.0 ** -0.5)
    skip = jnp.einsum("oc,bct->bot", params["w_skip"], h)
    return res, skip


if __name__ == "__main__":
    # Small shapes consistent with the module.
    B, C, E, S, T = 2, 16, 16, 8, 16
    K, D = 3, 2   # kernels, dilations -> padding = 2, output length == T

    key = jax.random.PRNGKey(0)
    ks = jax.random.split(key, 9)
    scale = 0.1
    params = {
        "w_embed": scale * jax.random.normal(ks[0], (C, E), jnp.float32),         # Linear(E -> C)
        "w_conv":  scale * jax.random.normal(ks[1], (2 * C, C, K), jnp.float32),  # Conv1d(C -> 2C, K)
        "b_conv":  scale * jax.random.normal(ks[2], (2 * C,), jnp.float32),
        "w_seq":   scale * jax.random.normal(ks[3], (2 * C, S), jnp.float32),     # Conv1d(S -> 2C, 1)
        "w_res":   scale * jax.random.normal(ks[4], (C, C), jnp.float32),         # Conv1d(C -> C, 1)
        "w_skip":  scale * jax.random.normal(ks[5], (C, C), jnp.float32),         # Conv1d(C -> C, 1)
    }
    inputs = jax.random.normal(ks[6], (B, C, T), jnp.float32)
    embed = jax.random.normal(ks[7], (B, E), jnp.float32)
    seq = jax.random.normal(ks[8], (B, S, T), jnp.float32)

    res_gold, skip_gold = ref_wavenet_block(inputs, embed, seq, params,
                                            kernels=K, dilations=D)

    # Production path: bf16 matmul inputs, f32 accumulation/gating/residual.
    res_bf, skip_bf = wavenet_block(inputs, embed, seq, params, kernels=K, dilations=D,
                                    compute_dtype=jnp.bfloat16)
    jax.block_until_ready((res_bf, skip_bf))
    assert jnp.allclose(res_bf, res_gold, rtol=5e-2, atol=2e-2), "bf16 residual mismatch"
    assert jnp.allclose(skip_bf, skip_gold, rtol=5e-2, atol=2e-2), "bf16 skip mismatch"

    # f32 path: exact structural validation against the reference.
    res_f, skip_f = wavenet_block(inputs, embed, seq, params, kernels=K, dilations=D,
                                  compute_dtype=jnp.float32)
    jax.block_until_ready((res_f, skip_f))
    assert jnp.allclose(res_f, res_gold, rtol=1e-4, atol=1e-4), "f32 residual mismatch"
    assert jnp.allclose(skip_f, skip_gold, rtol=1e-4, atol=1e-4), "f32 skip mismatch"

    print("KERNEL_OK")
</pallas_src>

<mosaic_0001>
module attributes {stable_mosaic.version = 11 : i64} {
  func.func @wavenet_block_kernel(%arg0: i32, %arg1: i32, %arg2: memref<1x16x128xbf16, #tpu.memory_space<vmem>>, %arg3: memref<1x1x16x4xbf16, #tpu.memory_space<vmem>>, %arg4: memref<1x8x128xbf16, #tpu.memory_space<vmem>>, %arg5: memref<32x1xf32, #tpu.memory_space<vmem>>, %arg6: memref<3x32x16xbf16, #tpu.memory_space<vmem>>, %arg7: memref<32x8xbf16, #tpu.memory_space<vmem>>, %arg8: memref<32x16xbf16, #tpu.memory_space<vmem>>, %arg9: memref<1x16x128xf32, #tpu.memory_space<vmem>>, %arg10: memref<1x16x128xf32, #tpu.memory_space<vmem>>, %arg11: memref<16x132xbf16, #tpu.memory_space<vmem>>) attributes {dimension_semantics = [#tpu.dimension_semantics<parallel>, #tpu.dimension_semantics<parallel>], iteration_bounds = array<i64: 2, 1>, scalar_prefetch = 0 : i64, scratch_operands = 1 : i64, tpu.core_type = #tpu.core_type<tc>, window_params = [{transform_indices = @transform_0, window_bounds = array<i64: 1, 16, 128>}, {transform_indices = @transform_1, window_bounds = array<i64: 1, 1, 16, 4>}, {transform_indices = @transform_2, window_bounds = array<i64: 1, 8, 128>}, {pipeline_mode = #tpu.pipeline_mode<synchronous>, transform_indices = @transform_3, window_bounds = array<i64: 32, 1>}, {pipeline_mode = #tpu.pipeline_mode<synchronous>, transform_indices = @transform_4, window_bounds = array<i64: 3, 32, 16>}, {pipeline_mode = #tpu.pipeline_mode<synchronous>, transform_indices = @transform_5, window_bounds = array<i64: 32, 8>}, {pipeline_mode = #tpu.pipeline_mode<synchronous>, transform_indices = @transform_6, window_bounds = array<i64: 32, 16>}, {transform_indices = @transform_7, window_bounds = array<i64: 1, 16, 128>}, {transform_indices = @transform_8, window_bounds = array<i64: 1, 16, 128>}]} {
    %c0 = arith.constant 0 : index
    %c0_0 = arith.constant 0 : index
    %c0_1 = arith.constant 0 : index
    %0 = vector.load %arg2[%c0, %c0_0, %c0_1] : memref<1x16x128xbf16, #tpu.memory_space<vmem>>, vector<1x16x128xbf16>
    %1 = vector.shape_cast %0 : vector<1x16x128xbf16> to vector<16x128xbf16>
    %c0_2 = arith.constant 0 : index
    %c0_3 = arith.constant 0 : index
    %2 = vector.load %arg11[%c0_2, %c0_3] : memref<16x132xbf16, #tpu.memory_space<vmem>>, vector<16x128xbf16>
    tpu.vector_store %arg11[%c0_2, %c0_3], %1 {strides = array<i32>} : memref<16x132xbf16, #tpu.memory_space<vmem>>, vector<16x128xbf16>,
    %c0_4 = arith.constant 0 : index
    %c0_5 = arith.constant 0 : index
    %c0_6 = arith.constant 0 : index
    %c0_7 = arith.constant 0 : index
    %3 = vector.load %arg3[%c0_4, %c0_5, %c0_6, %c0_7] : memref<1x1x16x4xbf16, #tpu.memory_space<vmem>>, vector<1x1x16x4xbf16>
    %4 = vector.shape_cast %3 : vector<1x1x16x4xbf16> to vector<16x4xbf16>
    %c0_8 = arith.constant 0 : index
    %c128 = arith.constant 128 : index
    %5 = vector.load %arg11[%c0_8, %c128] : memref<16x132xbf16, #tpu.memory_space<vmem>>, vector<16x4xbf16>
    tpu.vector_store %arg11[%c0_8, %c128], %4 {strides = array<i32>} : memref<16x132xbf16, #tpu.memory_space<vmem>>, vector<16x4xbf16>,
    %c0_9 = arith.constant 0 : index
    %c0_10 = arith.constant 0 : index
    %6 = vector.load %arg7[%c0_9, %c0_10] : memref<32x8xbf16, #tpu.memory_space<vmem>>, vector<32x8xbf16>
    %c0_11 = arith.constant 0 : index
    %c0_12 = arith.constant 0 : index
    %c0_13 = arith.constant 0 : index
    %7 = vector.load %arg4[%c0_11, %c0_12, %c0_13] : memref<1x8x128xbf16, #tpu.memory_space<vmem>>, vector<1x8x128xbf16>
    %8 = vector.shape_cast %7 : vector<1x8x128xbf16> to vector<8x128xbf16>
    %cst = arith.constant dense<0.000000e+00> : vector<32x128xf32>
    %9 = tpu.matmul %6, %8, %cst {dimension_numbers = #tpu.dot_dimension_numbers<[1], [0], [0], [1], [0, 0, 1, 1], [], []>} : vector<32x8xbf16>, vector<8x128xbf16>, vector<32x128xf32> -> vector<32x128xf32>
    %c0_14 = arith.constant 0 : index
    %c0_15 = arith.constant 0 : index
    %c0_16 = arith.constant 0 : index
    %10 = vector.load %arg6[%c0_14, %c0_15, %c0_16] : memref<3x32x16xbf16, #tpu.memory_space<vmem>>, vector<1x32x16xbf16>
    %11 = vector.shape_cast %10 : vector<1x32x16xbf16> to vector<32x16xbf16>
    %c0_17 = arith.constant 0 : index
    %c0_18 = arith.constant 0 : index
    %12 = vector.load %arg11[%c0_17, %c0_18] : memref<16x132xbf16, #tpu.memory_space<vmem>>, vector<16x128xbf16>
    %cst_19 = arith.constant dense<0.000000e+00> : vector<32x128xf32>
    %13 = tpu.matmul %11, %12, %cst_19 {dimension_numbers = #tpu.dot_dimension_numbers<[1], [0], [0], [1], [0, 0, 1, 1], [], []>} : vector<32x16xbf16>, vector<16x128xbf16>, vector<32x128xf32> -> vector<32x128xf32>
    %14 = arith.addf %9, %13 : vector<32x128xf32>
    %c1 = arith.constant 1 : index
    %c0_20 = arith.constant 0 : index
    %c0_21 = arith.constant 0 : index
    %15 = vector.load %arg6[%c1, %c0_20, %c0_21] : memref<3x32x16xbf16, #tpu.memory_space<vmem>>, vector<1x32x16xbf16>
    %16 = vector.shape_cast %15 : vector<1x32x16xbf16> to vector<32x16xbf16>
    %c0_22 = arith.constant 0 : index
    %c2 = arith.constant 2 : index
    %17 = vector.load %arg11[%c0_22, %c2] : memref<16x132xbf16, #tpu.memory_space<vmem>>, vector<16x128xbf16>
    %cst_23 = arith.constant dense<0.000000e+00> : vector<32x128xf32>
    %18 = tpu.matmul %16, %17, %cst_23 {dimension_numbers = #tpu.dot_dimension_numbers<[1], [0], [0], [1], [0, 0, 1, 1], [], []>} : vector<32x16xbf16>, vector<16x128xbf16>, vector<32x128xf32> -> vector<32x128xf32>
    %19 = arith.addf %14, %18 : vector<32x128xf32>
    %c2_24 = arith.constant 2 : index
    %c0_25 = arith.constant 0 : index
    %c0_26 = arith.constant 0 : index
    %20 = vector.load %arg6[%c2_24, %c0_25, %c0_26] : memref<3x32x16xbf16, #tpu.memory_space<vmem>>, vector<1x32x16xbf16>
    %21 = vector.shape_cast %20 : vector<1x32x16xbf16> to vector<32x16xbf16>
    %c0_27 = arith.constant 0 : index
    %c4 = arith.constant 4 : index
    %22 = vector.load %arg11[%c0_27, %c4] : memref<16x132xbf16, #tpu.memory_space<vmem>>, vector<16x128xbf16>
    %cst_28 = arith.constant dense<0.000000e+00> : vector<32x128xf32>
    %23 = tpu.matmul %21, %22, %cst_28 {dimension_numbers = #tpu.dot_dimension_numbers<[1], [0], [0], [1], [0, 0, 1, 1], [], []>} : vector<32x16xbf16>, vector<16x128xbf16>, vector<32x128xf32> -> vector<32x128xf32>
    %24 = arith.addf %19, %23 : vector<32x128xf32>
    %c0_29 = arith.constant 0 : index
    %c0_30 = arith.constant 0 : index
    %25 = vector.load %arg5[%c0_29, %c0_30] : memref<32x1xf32, #tpu.memory_space<vmem>>, vector<32x1xf32>
    %26 = vector.broadcast %25 : vector<32x1xf32> to vector<32x128xf32>
    %27 = arith.addf %24, %26 : vector<32x128xf32>
    %28 = vector.extract_strided_slice %27 {offsets = [0, 0], sizes = [16, 128], strides = [1, 1]} : vector<32x128xf32> to vector<16x128xf32>
    %29 = vector.extract_strided_slice %27 {offsets = [16, 0], sizes = [16, 128], strides = [1, 1]} : vector<32x128xf32> to vector<16x128xf32>
    %cst_31 = arith.constant 5.000000e-01 : f32
    %30 = vector.broadcast %cst_31 : f32 to vector<16x128xf32>
    %31 = arith.mulf %30, %28 : vector<16x128xf32>
    %32 = math.tanh %31 : vector<16x128xf32>
    %cst_32 = arith.constant 5.000000e-01 : f32
    %33 = vector.broadcast %cst_32 : f32 to vector<16x128xf32>
    %34 = arith.mulf %33, %32 : vector<16x128xf32>
    %cst_33 = arith.constant 5.000000e-01 : f32
    %35 = vector.broadcast %cst_33 : f32 to vector<16x128xf32>
    %36 = arith.addf %34, %35 : vector<16x128xf32>
    %37 = math.tanh %29 : vector<16x128xf32>
    %38 = arith.mulf %36, %37 : vector<16x128xf32>
    %c0_34 = arith.constant 0 : index
    %c0_35 = arith.constant 0 : index
    %39 = vector.load %arg8[%c0_34, %c0_35] : memref<32x16xbf16, #tpu.memory_space<vmem>>, vector<32x16xbf16>
    %40 = arith.truncf %38 : vector<16x128xf32> to vector<16x128xbf16>
    %cst_36 = arith.constant dense<0.000000e+00> : vector<32x128xf32>
    %41 = tpu.matmul %39, %40, %cst_36 {dimension_numbers = #tpu.dot_dimension_numbers<[1], [0], [0], [1], [0, 0, 1, 1], [], []>} : vector<32x16xbf16>, vector<16x128xbf16>, vector<32x128xf32> -> vector<32x128xf32>
    %cst_37 = arith.constant 0.707106769 : f32
    %42 = vector.broadcast %cst_37 : f32 to vector<16x128xf32>
    %43 = arith.mulf %38, %42 : vector<16x128xf32>
    %44 = vector.extract_strided_slice %41 {offsets = [0, 0], sizes = [16, 128], strides = [1, 1]} : vector<32x128xf32> to vector<16x128xf32>
    %45 = arith.addf %43, %44 : vector<16x128xf32>
    %c0_38 = arith.constant 0 : index
    %c0_39 = arith.constant 0 : index
    %c0_40 = arith.constant 0 : index
    %46 = vector.load %arg9[%c0_38, %c0_39, %c0_40] : memref<1x16x128xf32, #tpu.memory_space<vmem>>, vector<1x16x128xf32>
    %47 = vector.shape_cast %46 : vector<1x16x128xf32> to vector<16x128xf32>
    %48 = vector.shape_cast %45 : vector<16x128xf32> to vector<1x16x128xf32>
    tpu.vector_store %arg9[%c0_38, %c0_39, %c0_40], %48 {strides = array<i32>} : memref<1x16x128xf32, #tpu.memory_space<vmem>>, vector<1x16x128xf32>,
    %49 = vector.extract_strided_slice %41 {offsets = [16, 0], sizes = [16, 128], strides = [1, 1]} : vector<32x128xf32> to vector<16x128xf32>
    %c0_41 = arith.constant 0 : index
    %c0_42 = arith.constant 0 : index
    %c0_43 = arith.constant 0 : index
    %50 = vector.load %arg10[%c0_41, %c0_42, %c0_43] : memref<1x16x128xf32, #tpu.memory_space<vmem>>, vector<1x16x128xf32>
    %51 = vector.shape_cast %50 : vector<1x16x128xf32> to vector<16x128xf32>
    %52 = vector.shape_cast %49 : vector<16x128xf32> to vector<1x16x128xf32>
    tpu.vector_store %arg10[%c0_41, %c0_42, %c0_43], %52 {strides = array<i32>} : memref<1x16x128xf32, #tpu.memory_space<vmem>>, vector<1x16x128xf32>,
    return
  }
  func.func @transform_0(%arg0: i32, %arg1: i32) -> (i32, i32, i32) {
    %c0_i32 = arith.constant 0 : i32
    %c0_i32_0 = arith.constant 0 : i32
    return %arg0, %c0_i32, %arg1 : i32, i32, i32
  }
  func.func @transform_1(%arg0: i32, %arg1: i32) -> (i32, i32, i32, i32) {
    %c0_i32 = arith.constant 0 : i32
    %c0_i32_0 = arith.constant 0 : i32
    %c0_i32_1 = arith.constant 0 : i32
    return %arg0, %arg1, %c0_i32, %c0_i32_0 : i32, i32, i32, i32
  }
  func.func @transform_2(%arg0: i32, %arg1: i32) -> (i32, i32, i32) {
    %c0_i32 = arith.constant 0 : i32
    %c0_i32_0 = arith.constant 0 : i32
    return %arg0, %c0_i32, %arg1 : i32, i32, i32
  }
  func.func @transform_3(%arg0: i32, %arg1: i32) -> (i32, i32) {
    %c0_i32 = arith.constant 0 : i32
    %c0_i32_0 = arith.constant 0 : i32
    %c0_i32_1 = arith.constant 0 : i32
    return %c0_i32, %c0_i32_0 : i32, i32
  }
  func.func @transform_4(%arg0: i32, %arg1: i32) -> (i32, i32, i32) {
    %c0_i32 = arith.constant 0 : i32
    %c0_i32_0 = arith.constant 0 : i32
    %c0_i32_1 = arith.constant 0 : i32
    %c0_i32_2 = arith.constant 0 : i32
    return %c0_i32, %c0_i32_0, %c0_i32_1 : i32, i32, i32
  }
  func.func @transform_5(%arg0: i32, %arg1: i32) -> (i32, i32) {
    %c0_i32 = arith.constant 0 : i32
    %c0_i32_0 = arith.constant 0 : i32
    %c0_i32_1 = arith.constant 0 : i32
    return %c0_i32, %c0_i32_0 : i32, i32
  }
  func.func @transform_6(%arg0: i32, %arg1: i32) -> (i32, i32) {
    %c0_i32 = arith.constant 0 : i32
    %c0_i32_0 = arith.constant 0 : i32
    %c0_i32_1 = arith.constant 0 : i32
    return %c0_i32, %c0_i32_0 : i32, i32
  }
  func.func @transform_7(%arg0: i32, %arg1: i32) -> (i32, i32, i32) {
    %c0_i32 = arith.constant 0 : i32
    %c0_i32_0 = arith.constant 0 : i32
    return %arg0, %c0_i32, %arg1 : i32, i32, i32
  }
  func.func @transform_8(%arg0: i32, %arg1: i32) -> (i32, i32, i32) {
    %c0_i32 = arith.constant 0 : i32
    %c0_i32_0 = arith.constant 0 : i32
    return %arg0, %c0_i32, %arg1 : i32, i32, i32
  }
}

</mosaic_0001>

<llo_original>
// kernel: tpu_custom_call.1
$region0: #{tpu_custom_call.1}
  #allocation0 [shape = 'u32[]', space=smem, size = 0x4, offset = 0x4, fixed_abs, tag = 'smem constant byte address 0x4 - core index']
  #allocation1 [shape = 'u32[144,128]{1,0:T(1,128)}', space=vmem, size = 0x12000, scoped, tag = 'internal scratch']
  #allocation2 [shape = 'bf16[16,132]{1,0:T(16,128)(2,1)}', space=vmem, size = 0x2000, scoped, tag = 'scratch operand']
  %s0 = inlined_call_operand.vmem [shape: bf16[2,16,128], index: 0, kind: input, shape index: {}]
  %s1 = inlined_call_operand.vmem [shape: bf16[2,1,16,4], index: 1, kind: input, shape index: {}]
  %s2 = inlined_call_operand.vmem [shape: bf16[2,8,128], index: 2, kind: input, shape index: {}]
  %s3 = inlined_call_operand.vmem [shape: f32[32,1], index: 3, kind: input, shape index: {}]
  %s4 = inlined_call_operand.vmem [shape: bf16[3,32,16], index: 4, kind: input, shape index: {}]
  %s5 = inlined_call_operand.vmem [shape: bf16[32,8], index: 5, kind: input, shape index: {}]
  %s6 = inlined_call_operand.vmem [shape: bf16[32,16], index: 6, kind: input, shape index: {}]
  %s7 = inlined_call_operand.hbm [shape: f32[2,16,128], index: 7, kind: output, shape index: {0}]
  %s8 = inlined_call_operand.hbm [shape: f32[2,16,128], index: 8, kind: output, shape index: {1}]
  %9 = xla_tuple %s7, %s8
  %s10 = sld [smem:[#allocation0]]
  $region69: #{tpu_custom_call.1} parent=0
    _
  %s12 = ssub.s32 1, %s10
  %s13 = scalar_select 0, %s12, %s10
  $region1: #{tpu_custom_call.1} parent=0
    #allocation3 [shape = 'u8[16384]{0}', space=vmem, size = 0x4000, scoped, tag = 'output window, operand 0']
    #allocation4 [shape = 's32[2]{0}', space=sflag, size = 0x8, scoped, tag = 'scoped memory for tpu_custom_call.1']
    #allocation5 [shape = 'u8[16384]{0}', space=vmem, size = 0x4000, scoped, tag = 'output window, operand 1']
    #allocation6 [shape = 's32[2]{0}', space=sflag, size = 0x8, scoped, tag = 'scoped memory for tpu_custom_call.1']
    %14 = vsyncpa [#allocation4], 0
    %s15 = scalar_lea.sflag [#allocation4], 1
    %16 = vsyncpa %s15, 0
    %17 = vsyncpa [#allocation6], 0
    %s18 = scalar_lea.sflag [#allocation6], 1
    %19 = vsyncpa %s18, 0
    loop: start=0, step=1, limit=4
    $region2: #{tpu_custom_call.1} parent=1 // loop_pre_header
      _
    $region3: #{tpu_custom_call.1} parent=1 // loop_header
      %s21 = sphi 0, %s25
      %p22 = scmp.ge.s32.totalorder %s21, 4
      %s28 = sphi 0, %s40
      %s29 = sphi 0, %s36
      %s30 = sphi 0, %s28
      %s31 = sphi 0, %s29
      %s32 = sphi 0, %s30
      %s33 = sphi 0, %s31
      %s45 = sphi 0, %s47
      %s48 = sphi 0, %s45
      %s49 = sphi 0, %s48
      %s65 = sphi 0, %s49
      %s73 = sphi 0, %s75
      %s76 = sphi 0, %s73
      %s77 = sphi 0, %s76
      %s93 = sphi 0, %s77
      %s101 = sphi 0, %s103
      %s104 = sphi 0, %s101
      %s105 = sphi 0, %s104
      %s121 = sphi 0, %s105
      %s125 = sphi 0, %s125
      %s127 = sphi 0, %s125
      %s128 = sphi 0, %s127
      %s142 = sphi 0, %s128
      %s146 = sphi 0, %s146
      %s148 = sphi 0, %s146
      %s149 = sphi 0, %s148
      %s163 = sphi 0, %s149
      %s167 = sphi 0, %s167
      %s169 = sphi 0, %s167
      %s170 = sphi 0, %s169
      %s184 = sphi 0, %s170
      %s188 = sphi 0, %s188
      %s190 = sphi 0, %s188
      %s191 = sphi 0, %s190
      %s205 = sphi 0, %s191
      %s213 = sphi 0, %s215
      %s216 = sphi 0, %s213
      %s217 = sphi 0, %s216
      %s233 = sphi 0, %s217
      %s241 = sphi 0, %s243
      %s244 = sphi 0, %s241
      %s245 = sphi 0, %s244
      %s261 = sphi 0, %s245
    $region4: #{tpu_custom_call.1} parent=1 // loop_header_branch
      %24 = sbr.rel (%p22) target = $region8
    $region5: #{tpu_custom_call.1} parent=1 // loop_body
      %s26 = ssub.s32 %s21, 1
      %s27 = ssub.s32 %s21, 2
      %s34 = sadd.s32 1, %s29
      %p35 = scmp.ge.s32.totalorder %s34, 1
      %s36 = scalar_select %p35, 0, %s34
      %s37 = sadd.s32 1, %s28
      %s38 = scalar_select %p35, %s37, %s28
      %p39 = scmp.ge.s32.totalorder %s38, 2
      %s40 = scalar_select %p39, 0, %s38
      %s41 = ssub.s32 %s28, %s40
      %s42 = ssub.s32 %s29, %s36
      %s43 = sor.u32 %s41, %s42
      %p44 = scmp.eq.s32.totalorder %s43, 0
      %s46 = sadd.s32 %s45, 1
      %s47 = scalar_select %p44, %s45, %s46
      %p50 = pneg %p44
      %p51 = scmp.eq.s32.totalorder %s21, 1
      %p52 = por %p50, %p51
      %p53 = scmp.ne.s32.totalorder %s45, %s48
      %p54 = scmp.eq.s32.totalorder %s21, 0
      %p55 = por %p53, %p54
      %p56 = scmp.ne.s32.totalorder %s45, %s48
      %p57 = scmp.eq.s32.totalorder %s26, 1
      %p58 = por %p56, %p57
      %p59 = scmp.ne.s32.totalorder %s48, %s49
      %p60 = scmp.eq.s32.totalorder %s26, 0
      %p61 = por %p59, %p60
      %p62 = scmp.ne.s32.totalorder %s48, %s49
      %p63 = scmp.eq.s32.totalorder %s27, 1
      %p64 = por %p62, %p63
      %p66 = scmp.ne.s32.totalorder %s49, %s65
      %p67 = scmp.eq.s32.totalorder %s27, 0
      %p68 = por %p66, %p67
      %s69 = ssub.s32 %s28, %s40
      %s70 = ssub.s32 %s29, %s36
      %s71 = sor.u32 %s69, %s70
      %p72 = scmp.eq.s32.totalorder %s71, 0
      %s74 = sadd.s32 %s73, 1
      %s75 = scalar_select %p72, %s73, %s74
      %p78 = pneg %p72
      %p79 = scmp.eq.s32.totalorder %s21, 1
      %p80 = por %p78, %p79
      %p81 = scmp.ne.s32.totalorder %s73, %s76
      %p82 = scmp.eq.s32.totalorder %s21, 0
      %p83 = por %p81, %p82
      %p84 = scmp.ne.s32.totalorder %s73, %s76
      %p85 = scmp.eq.s32.totalorder %s26, 1
      %p86 = por %p84, %p85
      %p87 = scmp.ne.s32.totalorder %s76, %s77
      %p88 = scmp.eq.s32.totalorder %s26, 0
      %p89 = por %p87, %p88
      %p90 = scmp.ne.s32.totalorder %s76, %s77
      %p91 = scmp.eq.s32.totalorder %s27, 1
      %p92 = por %p90, %p91
      %p94 = scmp.ne.s32.totalorder %s77, %s93
      %p95 = scmp.eq.s32.totalorder %s27, 0
      %p96 = por %p94, %p95
      %s97 = ssub.s32 %s28, %s40
      %s98 = ssub.s32 %s29, %s36
      %s99 = sor.u32 %s97, %s98
      %p100 = scmp.eq.s32.totalorder %s99, 0
      %s102 = sadd.s32 %s101, 1
      %s103 = scalar_select %p100, %s101, %s102
      %p106 = pneg %p100
      %p107 = scmp.eq.s32.totalorder %s21, 1
      %p108 = por %p106, %p107
      %p109 = scmp.ne.s32.totalorder %s101, %s104
      %p110 = scmp.eq.s32.totalorder %s21, 0
      %p111 = por %p109, %p110
      %p112 = scmp.ne.s32.totalorder %s101, %s104
      %p113 = scmp.eq.s32.totalorder %s26, 1
      %p114 = por %p112, %p113
      %p115 = scmp.ne.s32.totalorder %s104, %s105
      %p116 = scmp.eq.s32.totalorder %s26, 0
      %p117 = por %p115, %p116
      %p118 = scmp.ne.s32.totalorder %s104, %s105
      %p119 = scmp.eq.s32.totalorder %s27, 1
      %p120 = por %p118, %p119
      %p122 = scmp.ne.s32.totalorder %s105, %s121
      %p123 = scmp.eq.s32.totalorder %s27, 0
      %p124 = por %p122, %p123
      %s126 = sadd.s32 %s125, 1
      %p129 = scmp.eq.s32.totalorder %s21, 1
      %p130 = scmp.ne.s32.totalorder %s125, %s127
      %p131 = scmp.eq.s32.totalorder %s21, 0
      %p132 = por %p130, %p131
      %p133 = scmp.ne.s32.totalorder %s125, %s127
      %p134 = scmp.eq.s32.totalorder %s26, 1
      %p135 = por %p133, %p134
      %p136 = scmp.ne.s32.totalorder %s127, %s128
      %p137 = scmp.eq.s32.totalorder %s26, 0
      %p138 = por %p136, %p137
      %p139 = scmp.ne.s32.totalorder %s127, %s128
      %p140 = scmp.eq.s32.totalorder %s27, 1
      %p141 = por %p139, %p140
      %p143 = scmp.ne.s32.totalorder %s128, %s142
      %p144 = scmp.eq.s32.totalorder %s27, 0
      %p145 = por %p143, %p144
      %s147 = sadd.s32 %s146, 1
      %p150 = scmp.eq.s32.totalorder %s21, 1
      %p151 = scmp.ne.s32.totalorder %s146, %s148
      %p152 = scmp.eq.s32.totalorder %s21, 0
      %p153 = por %p151, %p152
      %p154 = scmp.ne.s32.totalorder %s146, %s148
      %p155 = scmp.eq.s32.totalorder %s26, 1
      %p156 = por %p154, %p155
      %p157 = scmp.ne.s32.totalorder %s148, %s149
      %p158 = scmp.eq.s32.totalorder %s26, 0
      %p159 = por %p157, %p158
      %p160 = scmp.ne.s32.totalorder %s148, %s149
      %p161 = scmp.eq.s32.totalorder %s27, 1
      %p162 = por %p160, %p161
      %p164 = scmp.ne.s32.totalorder %s149, %s163
      %p165 = scmp.eq.s32.totalorder %s27, 0
      %p166 = por %p164, %p165
      %s168 = sadd.s32 %s167, 1
      %p171 = scmp.eq.s32.totalorder %s21, 1
      %p172 = scmp.ne.s32.totalorder %s167, %s169
      %p173 = scmp.eq.s32.totalorder %s21, 0
      %p174 = por %p172, %p173
      %p175 = scmp.ne.s32.totalorder %s167, %s169
      %p176 = scmp.eq.s32.totalorder %s26, 1
      %p177 = por %p175, %p176
      %p178 = scmp.ne.s32.totalorder %s169, %s170
      %p179 = scmp.eq.s32.totalorder %s26, 0
      %p180 = por %p178, %p179
      %p181 = scmp.ne.s32.totalorder %s169, %s170
      %p182 = scmp.eq.s32.totalorder %s27, 1
      %p183 = por %p181, %p182
      %p185 = scmp.ne.s32.totalorder %s170, %s184
      %p186 = scmp.eq.s32.totalorder %s27, 0
      %p187 = por %p185, %p186
      %s189 = sadd.s32 %s188, 1
      %p192 = scmp.eq.s32.totalorder %s21, 1
      %p193 = scmp.ne.s32.totalorder %s188, %s190
      %p194 = scmp.eq.s32.totalorder %s21, 0
      %p195 = por %p193, %p194
      %p196 = scmp.ne.s32.totalorder %s188, %s190
      %p197 = scmp.eq.s32.totalorder %s26, 1
      %p198 = por %p196, %p197
      %p199 = scmp.ne.s32.totalorder %s190, %s191
      %p200 = scmp.eq.s32.totalorder %s26, 0
      %p201 = por %p199, %p200
      %p202 = scmp.ne.s32.totalorder %s190, %s191
      %p203 = scmp.eq.s32.totalorder %s27, 1
      %p204 = por %p202, %p203
      %p206 = scmp.ne.s32.totalorder %s191, %s205
      %p207 = scmp.eq.s32.totalorder %s27, 0
      %p208 = por %p206, %p207
      %s209 = ssub.s32 %s28, %s40
      %s210 = ssub.s32 %s29, %s36
      %s211 = sor.u32 %s209, %s210
      %p212 = scmp.eq.s32.totalorder %s211, 0
      %s214 = sadd.s32 %s213, 1
      %s215 = scalar_select %p212, %s213, %s214
      %p218 = pneg %p212
      %p219 = scmp.eq.s32.totalorder %s21, 1
      %p220 = por %p218, %p219
      %p221 = scmp.ne.s32.totalorder %s213, %s216
      %p222 = scmp.eq.s32.totalorder %s21, 0
      %p223 = por %p221, %p222
      %p224 = scmp.ne.s32.totalorder %s213, %s216
      %p225 = scmp.eq.s32.totalorder %s26, 1
      %p226 = por %p224, %p225
      %p227 = scmp.ne.s32.totalorder %s216, %s217
      %p228 = scmp.eq.s32.totalorder %s26, 0
      %p229 = por %p227, %p228
      %p230 = scmp.ne.s32.totalorder %s216, %s217
      %p231 = scmp.eq.s32.totalorder %s27, 1
      %p232 = por %p230, %p231
      %p234 = scmp.ne.s32.totalorder %s217, %s233
      %p235 = scmp.eq.s32.totalorder %s27, 0
      %p236 = por %p234, %p235
      %s237 = ssub.s32 %s28, %s40
      %s238 = ssub.s32 %s29, %s36
      %s239 = sor.u32 %s237, %s238
      %p240 = scmp.eq.s32.totalorder %s239, 0
      %s242 = sadd.s32 %s241, 1
      %s243 = scalar_select %p240, %s241, %s242
      %p246 = pneg %p240
      %p247 = scmp.eq.s32.totalorder %s21, 1
      %p248 = por %p246, %p247
      %p249 = scmp.ne.s32.totalorder %s241, %s244
      %p250 = scmp.eq.s32.totalorder %s21, 0
      %p251 = por %p249, %p250
      %p252 = scmp.ne.s32.totalorder %s241, %s244
      %p253 = scmp.eq.s32.totalorder %s26, 1
      %p254 = por %p252, %p253
      %p255 = scmp.ne.s32.totalorder %s244, %s245
      %p256 = scmp.eq.s32.totalorder %s26, 0
      %p257 = por %p255, %p256
      %p258 = scmp.ne.s32.totalorder %s244, %s245
      %p259 = scmp.eq.s32.totalorder %s27, 1
      %p260 = por %p258, %p259
      %p262 = scmp.ne.s32.totalorder %s245, %s261
      %p263 = scmp.eq.s32.totalorder %s27, 0
      %p264 = por %p262, %p263
      %p265 = scmp.le.s32.totalorder 1, %s21
      %p266 = scmp.lt.s32.totalorder %s21, 3
      %p267 = pnand %p265, %p266
      %p268 = pneg %p267
      // Predicated region
      $region9: #{tpu_custom_call.1} parent=5 // pred_check
        _
      $region10: #{tpu_custom_call.1} parent=5 // pred_check_branch
        %270 = sbr.rel (%p267) target = $region12
      $region11: #{tpu_custom_call.1} parent=5 // pred_region
        %s271 = ssub.s32 %s21, 1
        // Predicated region
        $region13: #{tpu_custom_call.1} parent=11 // pred_check
          %p272 = pneg %p138
        $region14: #{tpu_custom_call.1} parent=11 // pred_check_branch
          %274 = sbr.rel (%p272) target = $region16
        $region15: #{tpu_custom_call.1} parent=11 // pred_region
          _
        $region16: #{tpu_custom_call.1} parent=11 // pred_fallthru
          _
        // Predicated region
        $region17: #{tpu_custom_call.1} parent=11 // pred_check
          %p275 = pneg %p159
        $region18: #{tpu_custom_call.1} parent=11 // pred_check_branch
          %277 = sbr.rel (%p275) target = $region20
        $region19: #{tpu_custom_call.1} parent=11 // pred_region
          _
        $region20: #{tpu_custom_call.1} parent=11 // pred_fallthru
          _
        // Predicated region
        $region21: #{tpu_custom_call.1} parent=11 // pred_check
          %p278 = pneg %p180
        $region22: #{tpu_custom_call.1} parent=11 // pred_check_branch
          %280 = sbr.rel (%p278) target = $region24
        $region23: #{tpu_custom_call.1} parent=11 // pred_region
          _
        $region24: #{tpu_custom_call.1} parent=11 // pred_fallthru
          _
        // Predicated region
        $region25: #{tpu_custom_call.1} parent=11 // pred_check
          %p281 = pneg %p201
        $region26: #{tpu_custom_call.1} parent=11 // pred_check_branch
          %283 = sbr.rel (%p281) target = $region28
        $region27: #{tpu_custom_call.1} parent=11 // pred_region
          _
        $region28: #{tpu_custom_call.1} parent=11 // pred_fallthru
          _
      $region12: #{tpu_custom_call.1} parent=5 // pred_fallthru
        _
      %p284 = scmp.lt.s32.totalorder %s21, 2
      // Predicated region
      $region29: #{tpu_custom_call.1} parent=5 // pred_check
        %p285 = pneg %p284
      $region30: #{tpu_custom_call.1} parent=5 // pred_check_branch
        %287 = sbr.rel (%p285) target = $region32
      $region31: #{tpu_custom_call.1} parent=5 // pred_region
        // Predicated region
        $region33: #{tpu_custom_call.1} parent=31 // pred_check
          %p288 = pneg %p55
        $region34: #{tpu_custom_call.1} parent=31 // pred_check_branch
          %290 = sbr.rel (%p288) target = $region36
        $region35: #{tpu_custom_call.1} parent=31 // pred_region
          %p291 = scmp.lt.s32.totalorder %s28, 1
          %s292 = scalar_select %p291, %s28, 1
          %p293 = scmp.lt.s32.totalorder %s29, 0
          %s294 = scalar_select %p293, %s29, 0
          %s295 = smul.addr %s292, 2
          %s296 = sadd.s32 %s294, %s295
          %s297 = smul.addr %s296, 4
          %s298 = scalar_lea.vmem %s0, %s297
        $region36: #{tpu_custom_call.1} parent=31 // pred_fallthru
          _
        // Predicated region
        $region37: #{tpu_custom_call.1} parent=31 // pred_check
          %p299 = pneg %p83
        $region38: #{tpu_custom_call.1} parent=31 // pred_check_branch
          %301 = sbr.rel (%p299) target = $region40
        $region39: #{tpu_custom_call.1} parent=31 // pred_region
          %p302 = scmp.lt.s32.totalorder %s28, 1
          %s303 = scalar_select %p302, %s28, 1
          %p304 = scmp.lt.s32.totalorder %s29, 0
          %s305 = scalar_select %p304, %s29, 0
          %s306 = smul.addr %s305, 2
          %s307 = smul.addr %s303, 2
          %s308 = sadd.s32 %s306, %s307
          %s309 = smul.addr %s308, 4
          %s310 = scalar_lea.vmem %s1, %s309
        $region40: #{tpu_custom_call.1} parent=31 // pred_fallthru
          _
        // Predicated region
        $region41: #{tpu_custom_call.1} parent=31 // pred_check
          %p311 = pneg %p111
        $region42: #{tpu_custom_call.1} parent=31 // pred_check_branch
          %313 = sbr.rel (%p311) target = $region44
        $region43: #{tpu_custom_call.1} parent=31 // pred_region
          %p314 = scmp.lt.s32.totalorder %s28, 1
          %s315 = scalar_select %p314, %s28, 1
          %p316 = scmp.lt.s32.totalorder %s29, 0
          %s317 = scalar_select %p316, %s29, 0
          %s318 = sadd.s32 %s317, %s315
          %s319 = smul.addr %s318, 4
          %s320 = scalar_lea.vmem %s2, %s319
        $region44: #{tpu_custom_call.1} parent=31 // pred_fallthru
          _
      $region32: #{tpu_custom_call.1} parent=5 // pred_fallthru
        _
      %p321 = scmp.le.s32.totalorder 1, %s21
      %p322 = scmp.lt.s32.totalorder %s21, 3
      %p323 = pnand %p321, %p322
      %p324 = pneg %p323
      // Predicated region
      $region45: #{tpu_custom_call.1} parent=5 // pred_check
        _
      $region46: #{tpu_custom_call.1} parent=5 // pred_check_branch
        %326 = sbr.rel (%p323) target = $region48
      $region47: #{tpu_custom_call.1} parent=5 // pred_region
        %s327 = ssub.s32 %s21, 1
        %p328 = scmp.lt.s32.totalorder %s30, 1
        %s329 = scalar_select %p328, %s30, 1
        %p330 = scmp.lt.s32.totalorder %s31, 0
        %s331 = scalar_select %p330, %s31, 0
        %s332 = smul.addr %s329, 2
        %s333 = sadd.s32 %s331, %s332
        %s334 = smul.addr %s333, 4
        %s335 = scalar_lea.vmem %s0, %s334
        %p336 = pneg %p61
        %p337 = pneg %p58
        %p338 = scmp.lt.s32.totalorder %s30, 1
        %s339 = scalar_select %p338, %s30, 1
        %p340 = scmp.lt.s32.totalorder %s31, 0
        %s341 = scalar_select %p340, %s31, 0
        %s342 = smul.addr %s341, 2
        %s343 = smul.addr %s339, 2
        %s344 = sadd.s32 %s342, %s343
        %s345 = smul.addr %s344, 4
        %s346 = scalar_lea.vmem %s1, %s345
        %p347 = pneg %p89
        %p348 = pneg %p86
        %p349 = scmp.lt.s32.totalorder %s30, 1
        %s350 = scalar_select %p349, %s30, 1
        %p351 = scmp.lt.s32.totalorder %s31, 0
        %s352 = scalar_select %p351, %s31, 0
        %s353 = sadd.s32 %s352, %s350
        %s354 = smul.addr %s353, 4
        %s355 = scalar_lea.vmem %s2, %s354
        %p356 = pneg %p117
        %p357 = pneg %p114
        %p358 = pneg %p138
        %p359 = pneg %p135
        %p360 = pneg %p159
        %p361 = pneg %p156
        %p362 = pneg %p180
        %p363 = pneg %p177
        %p364 = pneg %p201
        %p365 = pneg %p198
        %p366 = pneg %p229
        %p367 = pneg %p226
        %s368 = sand.u32 %s216, 1
        %s369 = scalar_lea.sflag [#allocation4], %s368
        %s370 = sand.u32 %s216, 1
        %s371 = smul.addr %s370, 16
        %s372 = scalar_lea.vmem [#allocation3], %s371
        %p373 = pneg %p257
        %p374 = pneg %p254
        %s375 = sand.u32 %s244, 1
        %s376 = scalar_lea.sflag [#allocation6], %s375
        %s377 = sand.u32 %s244, 1
        %s378 = smul.addr %s377, 16
        %s379 = scalar_lea.vmem [#allocation5], %s378
        %p380 = scmp.lt.s32.totalorder %s30, 1
        %s381 = scalar_select %p380, %s30, 1
        %p382 = scmp.lt.s32.totalorder %s31, 0
        %s383 = scalar_select %p382, %s31, 0
        %s384 = smul.addr %s381, 2
        %s385 = sadd.s32 %s383, %s384
        %s386 = smul.addr %s385, 4
        %s387 = scalar_lea.vmem %s0, %s386
        %p388 = scmp.lt.s32.totalorder %s30, 1
        %s389 = scalar_select %p388, %s30, 1
        %p390 = scmp.lt.s32.totalorder %s31, 0
        %s391 = scalar_select %p390, %s31, 0
        %s392 = smul.addr %s391, 2
        %s393 = smul.addr %s389, 2
        %s394 = sadd.s32 %s392, %s393
        %s395 = smul.addr %s394, 4
        %s396 = scalar_lea.vmem %s1, %s395
        %p397 = scmp.lt.s32.totalorder %s30, 1
        %s398 = scalar_select %p397, %s30, 1
        %p399 = scmp.lt.s32.totalorder %s31, 0
        %s400 = scalar_select %p399, %s31, 0
        %s401 = sadd.s32 %s400, %s398
        %s402 = smul.addr %s401, 4
        %s403 = scalar_lea.vmem %s2, %s402
        %v405 = vld [vmem:[%s387] sm:$0xf]
        %v406 = vld [vmem:[%s387 + $0x4] sm:$0xf]
        %v409 = vunpack.c.l.b16 %v405
        %v410 = vunpack.c.l.b16 %v406
        %v411 = vpack.c.b16 %v410, %v409
        %413 = vst [vmem:[#allocation2] sm:$0xff] %v411
        %v414 = vld [vmem:[%s396] sm:$0xf]
        %v415 = vld [vmem:[%s396 + $0x4] sm:$0xf]
        %v418 = vunpack.c.l.b16 %v414
        %v419 = vunpack.c.l.b16 %v415
        %v420 = vpack.c.b16 %v419, %v418
        %vm422 = vcmask 31744
        %423 = vst.msk [vmem:[#allocation2 + $0x8] sm:$0xff] %vm422, %v420
        %v424 = vld [vmem:[%s5] sm:$0xf]
        %v425 = vld [vmem:[%s5 + $0x4] sm:$0xf]
        %v426 = vld [vmem:[%s5 + $0x8] sm:$0xf]
        %v427 = vld [vmem:[%s5 + $0xc] sm:$0xf]
        %v428 = vld [vmem:[%s403] sm:$0xf]
        %v429 = vld [vmem:[%s4] sm:$0xf]
        %v430 = vld [vmem:[%s4 + $0x4] sm:$0xf]
        %v431 = vld [vmem:[%s4 + $0x8] sm:$0xf]
        %v432 = vld [vmem:[%s4 + $0xc] sm:$0xf]
        %v433 = vld [vmem:[#allocation2] sm:$0xff]
        %v438 = vunpack.c.l.b16 %v429
        %v439 = vunpack.c.l.b16 %v430
        %v440 = vunpack.c.l.b16 %v431
        %v441 = vunpack.c.l.b16 %v432
        %v442 = vpack.c.b16 %v439, %v438
        %v443 = vpack.c.b16 %v441, %v440
        %vm444 = vcmask 130048
        %v446 = vsel %vm444, %v442, 0
        %v449 = vsel %vm444, %v443, 0
        %451 = vmatprep.subr.bf16.mxu0 0
        %452 = vmatpush1.bf16.msra.mxu0 %v433
        %453 = vmatprep.subr.bf16.mxu0 0
        %454 = vmatpush1.bf16.msra.mxu0 0
        %455 = vmatprep.subr.bf16.mxu0 0
        %456 = vmatpush1.bf16.msra.mxu0 0
        %457 = vmatprep.subr.bf16.mxu0 0
        %458 = vmatpush1.bf16.msra.mxu0 0
        %459 = vmatprep.subr.bf16.mxu0 0
        %460 = vmatpush1.bf16.msra.mxu0 0
        %461 = vmatprep.subr.bf16.mxu0 0
        %462 = vmatpush1.bf16.msra.mxu0 0
        %463 = vmatprep.subr.bf16.mxu0 0
        %464 = vmatpush1.bf16.msra.mxu0 0
        %465 = vmatprep.subr.bf16.mxu0 0
        %466 = vmatpush1.bf16.msra.mxu0 0
        %467 = vmatprep.subr.bf16.mxu0 0
        %468 = vmatpush1.bf16.msra.mxu0 0
        %469 = vmatprep.subr.bf16.mxu0 0
        %470 = vmatpush1.bf16.msra.mxu0 0
        %471 = vmatprep.subr.bf16.mxu0 0
        %472 = vmatpush1.bf16.msra.mxu0 0
        %473 = vmatprep.subr.bf16.mxu0 0
        %474 = vmatpush1.bf16.msra.mxu0 0
        %475 = vmatprep.subr.bf16.mxu0 0
        %476 = vmatpush1.bf16.msra.mxu0 0
        %477 = vmatprep.subr.bf16.mxu0 0
        %478 = vmatpush1.bf16.msra.mxu0 0
        %479 = vmatprep.subr.bf16.mxu0 0
        %480 = vmatpush1.bf16.msra.mxu0 0
        %481 = vmatprep.subr.bf16.mxu0 0
        %482 = vmatpush1.bf16.msra.mxu0 0
        %483 = vmatprep.mubr.bf16.mxu0 0
        %484 = vmatmul.mubr.bf16.gmra.mrb[0].mxu0 %v446
        %v485 = vpop.f32.mrb[0].mxu0
        %v486 = vadd.f32 0.0, %v485
        %v487 = vpop.f32.mrb[0].mxu0
        %v488 = vpop.f32.mrb[0].mxu0
        %v489 = vadd.f32 0.0, %v488
        %v490 = vpop.f32.mrb[0].mxu0
        %491 = vmatprep.mubr.bf16.mxu0 0
        %492 = vmatmul.mubr.bf16.gmra.mrb[0].mxu0 %v449
        %v493 = vpop.f32.mrb[0].mxu0
        %v494 = vadd.f32 0.0, %v493
        %v495 = vpop.f32.mrb[0].mxu0
        %v496 = vpop.f32.mrb[0].mxu0
        %v497 = vadd.f32 0.0, %v496
        %v498 = vpop.f32.mrb[0].mxu0
        %499 = vdwg.mxu0
        %v504 = vunpack.c.l.b16 %v424
        %v505 = vunpack.c.l.b16 %v425
        %v506 = vunpack.c.l.b16 %v426
        %v507 = vunpack.c.l.b16 %v427
        %v508 = vpack.c.b16 %v505, %v504
        %v509 = vpack.c.b16 %v507, %v506
        %vm510 = vcmask 64512
        %v512 = vsel %vm510, %v508, 0
        %v515 = vsel %vm510, %v509, 0
        %vm517 = vcmask 1043456
        %v519 = vsel %vm517, %v428, 0
        %521 = vmatprep.subr.bf16.mxu0 0
        %522 = vmatpush1.bf16.msra.mxu0 %v519
        %523 = vmatprep.subr.bf16.mxu0 0
        %524 = vmatpush1.bf16.msra.mxu0 0
        %525 = vmatprep.subr.bf16.mxu0 0
        %526 = vmatpush1.bf16.msra.mxu0 0
        %527 = vmatprep.subr.bf16.mxu0 0
        %528 = vmatpush1.bf16.msra.mxu0 0
        %529 = vmatprep.subr.bf16.mxu0 0
        %530 = vmatpush1.bf16.msra.mxu0 0
        %531 = vmatprep.subr.bf16.mxu0 0
        %532 = vmatpush1.bf16.msra.mxu0 0
        %533 = vmatprep.subr.bf16.mxu0 0
        %534 = vmatpush1.bf16.msra.mxu0 0
        %535 = vmatprep.subr.bf16.mxu0 0
        %536 = vmatpush1.bf16.msra.mxu0 0
        %537 = vmatprep.subr.bf16.mxu0 0
        %538 = vmatpush1.bf16.msra.mxu0 0
        %539 = vmatprep.subr.bf16.mxu0 0
        %540 = vmatpush1.bf16.msra.mxu0 0
        %541 = vmatprep.subr.bf16.mxu0 0
        %542 = vmatpush1.bf16.msra.mxu0 0
        %543 = vmatprep.subr.bf16.mxu0 0
        %544 = vmatpush1.bf16.msra.mxu0 0
        %545 = vmatprep.subr.bf16.mxu0 0
        %546 = vmatpush1.bf16.msra.mxu0 0
        %547 = vmatprep.subr.bf16.mxu0 0
        %548 = vmatpush1.bf16.msra.mxu0 0
        %549 = vmatprep.subr.bf16.mxu0 0
        %550 = vmatpush1.bf16.msra.mxu0 0
        %551 = vmatprep.subr.bf16.mxu0 0
        %552 = vmatpush1.bf16.msra.mxu0 0
        %553 = vmatprep.mubr.bf16.mxu0 0
        %554 = vmatmul.mubr.bf16.gmra.mrb[0].mxu0 %v512
        %v555 = vpop.f32.mrb[0].mxu0
        %v556 = vadd.f32 %v486, %v555
        %v557 = vpop.f32.mrb[0].mxu0
        %v558 = vpop.f32.mrb[0].mxu0
        %v559 = vadd.f32 %v489, %v558
        %v560 = vpop.f32.mrb[0].mxu0
        %561 = vmatprep.mubr.bf16.mxu0 0
        %562 = vmatmul.mubr.bf16.gmra.mrb[0].mxu0 %v515
        %v563 = vpop.f32.mrb[0].mxu0
        %v564 = vadd.f32 %v494, %v563
        %v565 = vpop.f32.mrb[0].mxu0
        %v566 = vpop.f32.mrb[0].mxu0
        %v567 = vadd.f32 %v497, %v566
        %v568 = vpop.f32.mrb[0].mxu0
        %569 = vdwg.mxu0
        %s570 = scalar_lea.vmem %s4, 16
        %v571 = vld [vmem:[%s570] sm:$0xf]
        %v572 = vld [vmem:[%s570 + $0x4] sm:$0xf]
        %v573 = vld [vmem:[%s570 + $0x8] sm:$0xf]
        %v574 = vld [vmem:[%s570 + $0xc] sm:$0xf]
        %v575 = vld [vmem:[#allocation2] sm:$0xff]
        %v576 = vld [vmem:[#allocation2 + $0x8] sm:$0xff]
        %v581 = vunpack.c.l.b16 %v571
        %v582 = vunpack.c.l.b16 %v572
        %v583 = vunpack.c.l.b16 %v573
        %v584 = vunpack.c.l.b16 %v574
        %v585 = vpack.c.b16 %v582, %v581
        %v586 = vpack.c.b16 %v584, %v583
        %589 = vrot.lane.b32.xlu0 %v575, 126
        %v590 = vpop.permute.xlu0 %589
        %591 = vrot.lane.b32.xlu0 %v576, 126
        %v592 = vpop.permute.xlu0 %591
        %vm593 = vcmask 1031168
        %v594 = vsel %vm593, %v590, %v592
        %v597 = vsel %vm444, %v585, 0
        %v600 = vsel %vm444, %v586, 0
        %602 = vmatprep.subr.bf16.mxu0 0
        %603 = vmatpush1.bf16.msra.mxu0 %v594
        %604 = vmatprep.subr.bf16.mxu0 0
        %605 = vmatpush1.bf16.msra.mxu0 0
        %606 = vmatprep.subr.bf16.mxu0 0
        %607 = vmatpush1.bf16.msra.mxu0 0
        %608 = vmatprep.subr.bf16.mxu0 0
        %609 = vmatpush1.bf16.msra.mxu0 0
        %610 = vmatprep.subr.bf16.mxu0 0
        %611 = vmatpush1.bf16.msra.mxu0 0
        %612 = vmatprep.subr.bf16.mxu0 0
        %613 = vmatpush1.bf16.msra.mxu0 0
        %614 = vmatprep.subr.bf16.mxu0 0
        %615 = vmatpush1.bf16.msra.mxu0 0
        %616 = vmatprep.subr.bf16.mxu0 0
        %617 = vmatpush1.bf16.msra.mxu0 0
        %618 = vmatprep.subr.bf16.mxu0 0
        %619 = vmatpush1.bf16.msra.mxu0 0
        %620 = vmatprep.subr.bf16.mxu0 0
        %621 = vmatpush1.bf16.msra.mxu0 0
        %622 = vmatprep.subr.bf16.mxu0 0
        %623 = vmatpush1.bf16.msra.mxu0 0
        %624 = vmatprep.subr.bf16.mxu0 0
        %625 = vmatpush1.bf16.msra.mxu0 0
        %626 = vmatprep.subr.bf16.mxu0 0
        %627 = vmatpush1.bf16.msra.mxu0 0
        %628 = vmatprep.subr.bf16.mxu0 0
        %629 = vmatpush1.bf16.msra.mxu0 0
        %630 = vmatprep.subr.bf16.mxu0 0
        %631 = vmatpush1.bf16.msra.mxu0 0
        %632 = vmatprep.subr.bf16.mxu0 0
        %633 = vmatpush1.bf16.msra.mxu0 0
        %634 = vmatprep.mubr.bf16.mxu0 0
        %635 = vmatmul.mubr.bf16.gmra.mrb[0].mxu0 %v597
        %v636 = vpop.f32.mrb[0].mxu0
        %v637 = vadd.f32 0.0, %v636
        %v638 = vpop.f32.mrb[0].mxu0
        %v639 = vpop.f32.mrb[0].mxu0
        %v640 = vadd.f32 0.0, %v639
        %v641 = vpop.f32.mrb[0].mxu0
        %642 = vmatprep.mubr.bf16.mxu0 0
        %643 = vmatmul.mubr.bf16.gmra.mrb[0].mxu0 %v600
        %v644 = vpop.f32.mrb[0].mxu0
        %v645 = vadd.f32 0.0, %v644
        %v646 = vpop.f32.mrb[0].mxu0
        %v647 = vpop.f32.mrb[0].mxu0
        %v648 = vadd.f32 0.0, %v647
        %v649 = vpop.f32.mrb[0].mxu0
        %650 = vdwg.mxu0
        %v651 = vadd.f32 %v556, %v637
        %v652 = vadd.f32 %v559, %v640
        %v653 = vadd.f32 %v564, %v645
        %v654 = vadd.f32 %v567, %v648
        %s655 = scalar_lea.vmem %s4, 32
        %v656 = vld [vmem:[%s655] sm:$0xf]
        %v657 = vld [vmem:[%s655 + $0x4] sm:$0xf]
        %v658 = vld [vmem:[%s655 + $0x8] sm:$0xf]
        %v659 = vld [vmem:[%s655 + $0xc] sm:$0xf]
        %v664 = vunpack.c.l.b16 %v656
        %v665 = vunpack.c.l.b16 %v657
        %v666 = vunpack.c.l.b16 %v658
        %v667 = vunpack.c.l.b16 %v659
        %v668 = vpack.c.b16 %v665, %v664
        %v669 = vpack.c.b16 %v667, %v666
        %670 = vrot.lane.b32.xlu0 %v575, 124
        %v671 = vpop.permute.xlu0 %670
        %672 = vrot.lane.b32.xlu0 %v576, 124
        %v673 = vpop.permute.xlu0 %672
        %vm674 = vcmask 1014784
        %v675 = vsel %vm674, %v671, %v673
        %v678 = vsel %vm444, %v668, 0
        %v681 = vsel %vm444, %v669, 0
        %683 = vmatprep.subr.bf16.mxu0 0
        %684 = vmatpush1.bf16.msra.mxu0 %v675
        %685 = vmatprep.subr.bf16.mxu0 0
        %686 = vmatpush1.bf16.msra.mxu0 0
        %687 = vmatprep.subr.bf16.mxu0 0
        %688 = vmatpush1.bf16.msra.mxu0 0
        %689 = vmatprep.subr.bf16.mxu0 0
        %690 = vmatpush1.bf16.msra.mxu0 0
        %691 = vmatprep.subr.bf16.mxu0 0
        %692 = vmatpush1.bf16.msra.mxu0 0
        %693 = vmatprep.subr.bf16.mxu0 0
        %694 = vmatpush1.bf16.msra.mxu0 0
        %695 = vmatprep.subr.bf16.mxu0 0
        %696 = vmatpush1.bf16.msra.mxu0 0
        %697 = vmatprep.subr.bf16.mxu0 0
        %698 = vmatpush1.bf16.msra.mxu0 0
        %699 = vmatprep.subr.bf16.mxu0 0
        %700 = vmatpush1.bf16.msra.mxu0 0
        %701 = vmatprep.subr.bf16.mxu0 0
        %702 = vmatpush1.bf16.msra.mxu0 0
        %703 = vmatprep.subr.bf16.mxu0 0
        %704 = vmatpush1.bf16.msra.mxu0 0
        %705 = vmatprep.subr.bf16.mxu0 0
        %706 = vmatpush1.bf16.msra.mxu0 0
        %707 = vmatprep.subr.bf16.mxu0 0
        %708 = vmatpush1.bf16.msra.mxu0 0
        %709 = vmatprep.subr.bf16.mxu0 0
        %710 = vmatpush1.bf16.msra.mxu0 0
        %711 = vmatprep.subr.bf16.mxu0 0
        %712 = vmatpush1.bf16.msra.mxu0 0
        %713 = vmatprep.subr.bf16.mxu0 0
        %714 = vmatpush1.bf16.msra.mxu0 0
        %715 = vmatprep.mubr.bf16.mxu0 0
        %716 = vmatmul.mubr.bf16.gmra.mrb[0].mxu0 %v678
        %v717 = vpop.f32.mrb[0].mxu0
        %v718 = vadd.f32 0.0, %v717
        %v719 = vpop.f32.mrb[0].mxu0
        %v720 = vpop.f32.mrb[0].mxu0
        %v721 = vadd.f32 0.0, %v720
        %v722 = vpop.f32.mrb[0].mxu0
        %723 = vmatprep.mubr.bf16.mxu0 0
        %724 = vmatmul.mubr.bf16.gmra.mrb[0].mxu0 %v681
        %v725 = vpop.f32.mrb[0].mxu0
        %v726 = vadd.f32 0.0, %v725
        %v727 = vpop.f32.mrb[0].mxu0
        %v728 = vpop.f32.mrb[0].mxu0
        %v729 = vadd.f32 0.0, %v728
        %v730 = vpop.f32.mrb[0].mxu0
        %731 = vdwg.mxu0
        %v732 = vadd.f32 %v651, %v718
        %v733 = vadd.f32 %v652, %v721
        %v734 = vadd.f32 %v653, %v726
        %v735 = vadd.f32 %v654, %v729
        %v736 = vld [vmem:[%s3] sm:$0xff]
        %v737 = vld [vmem:[%s3 + $0x8] sm:$0xff]
        %v738 = vld [vmem:[%s3 + $0x10] sm:$0xff]
        %v739 = vld [vmem:[%s3 + $0x18] sm:$0xff]
        %741 = vset.pattern.permute.xlu0 0
        %742 = vperm.xlu0 %741, %v736
        %v743 = vpop.permute.xlu0 %742
        %746 = vset.pattern.permute.xlu0 0
        %747 = vperm.xlu0 %746, %v737
        %v748 = vpop.permute.xlu0 %747
        %751 = vset.pattern.permute.xlu0 0
        %752 = vperm.xlu0 %751, %v738
        %v753 = vpop.permute.xlu0 %752
        %756 = vset.pattern.permute.xlu0 0
        %757 = vperm.xlu0 %756, %v739
        %v758 = vpop.permute.xlu0 %757
        %v760 = vadd.f32 %v732, %v743
        %v761 = vadd.f32 %v733, %v748
        %v762 = vadd.f32 %v734, %v753
        %v763 = vadd.f32 %v735, %v758
        %v764 = vmul.f32 %v760, 0.5
        %v765 = vmul.f32 %v761, 0.5
        %v766 = vtanh.pop %v764
        %v767 = vtanh.pop %v765
        %v768 = vmul.f32 %v766, 0.5
        %v769 = vmul.f32 %v767, 0.5
        %v770 = vadd.f32 %v768, 0.5
        %v771 = vadd.f32 %v769, 0.5
        %v772 = vtanh.pop %v762
        %v773 = vtanh.pop %v763
        %v774 = vmul.f32 %v770, %v772
        %v775 = vmul.f32 %v771, %v773
        %v776 = vld [vmem:[%s6] sm:$0xf]
        %v777 = vld [vmem:[%s6 + $0x4] sm:$0xf]
        %v778 = vld [vmem:[%s6 + $0x8] sm:$0xf]
        %v779 = vld [vmem:[%s6 + $0xc] sm:$0xf]
        %v780 = vpack.c.bf16 %v775, %v774
        %v785 = vunpack.c.l.b16 %v776
        %v786 = vunpack.c.l.b16 %v777
        %v787 = vunpack.c.l.b16 %v778
        %v788 = vunpack.c.l.b16 %v779
        %v789 = vpack.c.b16 %v786, %v785
        %v790 = vpack.c.b16 %v788, %v787
        %v792 = vsel %vm444, %v789, 0
        %v795 = vsel %vm444, %v790, 0
        %797 = vmatprep.subr.bf16.mxu0 0
        %798 = vmatpush1.bf16.msra.mxu0 %v780
        %799 = vmatprep.subr.bf16.mxu0 0
        %800 = vmatpush1.bf16.msra.mxu0 0
        %801 = vmatprep.subr.bf16.mxu0 0
        %802 = vmatpush1.bf16.msra.mxu0 0
        %803 = vmatprep.subr.bf16.mxu0 0
        %804 = vmatpush1.bf16.msra.mxu0 0
        %805 = vmatprep.subr.bf16.mxu0 0
        %806 = vmatpush1.bf16.msra.mxu0 0
        %807 = vmatprep.subr.bf16.mxu0 0
        %808 = vmatpush1.bf16.msra.mxu0 0
        %809 = vmatprep.subr.bf16.mxu0 0
        %810 = vmatpush1.bf16.msra.mxu0 0
        %811 = vmatprep.subr.bf16.mxu0 0
        %812 = vmatpush1.bf16.msra.mxu0 0
        %813 = vmatprep.subr.bf16.mxu0 0
        %814 = vmatpush1.bf16.msra.mxu0 0
        %815 = vmatprep.subr.bf16.mxu0 0
        %816 = vmatpush1.bf16.msra.mxu0 0
        %817 = vmatprep.subr.bf16.mxu0 0
        %818 = vmatpush1.bf16.msra.mxu0 0
        %819 = vmatprep.subr.bf16.mxu0 0
        %820 = vmatpush1.bf16.msra.mxu0 0
        %821 = vmatprep.subr.bf16.mxu0 0
        %822 = vmatpush1.bf16.msra.mxu0 0
        %823 = vmatprep.subr.bf16.mxu0 0
        %824 = vmatpush1.bf16.msra.mxu0 0
        %825 = vmatprep.subr.bf16.mxu0 0
        %826 = vmatpush1.bf16.msra.mxu0 0
        %827 = vmatprep.subr.bf16.mxu0 0
        %828 = vmatpush1.bf16.msra.mxu0 0
        %829 = vmatprep.mubr.bf16.mxu0 0
        %830 = vmatmul.mubr.bf16.gmra.mrb[0].mxu0 %v792
        %v831 = vpop.f32.mrb[0].mxu0
        %v832 = vadd.f32 0.0, %v831
        %v833 = vpop.f32.mrb[0].mxu0
        %v834 = vpop.f32.mrb[0].mxu0
        %v835 = vadd.f32 0.0, %v834
        %v836 = vpop.f32.mrb[0].mxu0
        %837 = vmatprep.mubr.bf16.mxu0 0
        %838 = vmatmul.mubr.bf16.gmra.mrb[0].mxu0 %v795
        %v839 = vpop.f32.mrb[0].mxu0
        %v840 = vadd.f32 0.0, %v839
        %v841 = vpop.f32.mrb[0].mxu0
        %v842 = vpop.f32.mrb[0].mxu0
        %v843 = vadd.f32 0.0, %v842
        %v844 = vpop.f32.mrb[0].mxu0
        %845 = vdwg.mxu0
        %v846 = vmul.f32 %v774, 0.70710677
        %v847 = vmul.f32 %v775, 0.70710677
        %v848 = vadd.f32 %v846, %v832
        %v849 = vadd.f32 %v847, %v835
        %850 = vst [vmem:[%s372] sm:$0xff] %v848
        %851 = vst [vmem:[%s372 + $0x8] sm:$0xff] %v849
        %852 = vst [vmem:[%s379] sm:$0xff] %v840
        %853 = vst [vmem:[%s379 + $0x8] sm:$0xff] %v843
        %s854 = sand.u32 %s216, 1
        %s855 = scalar_lea.sflag [#allocation4], %s854
        %s856 = sand.u32 %s216, 1
        %s857 = smul.addr %s856, 16
        %s858 = scalar_lea.vmem [#allocation3], %s857
        %s859 = sand.u32 %s244, 1
        %s860 = scalar_lea.sflag [#allocation6], %s859
        %s861 = sand.u32 %s244, 1
        %s862 = smul.addr %s861, 16
        %s863 = scalar_lea.vmem [#allocation5], %s862
        // Predicated region
        $region49: #{tpu_custom_call.1} parent=47 // pred_check
          %p864 = pneg %p226
        $region50: #{tpu_custom_call.1} parent=47 // pred_check_branch
          %866 = sbr.rel (%p864) target = $region52
        $region51: #{tpu_custom_call.1} parent=47 // pred_region
          %s868 = ssub.s32 256, 256
          %869 = vsyncadd %s855, %s868
          %s870 = smul.addr %s30, 2
          %s871 = sadd.s32 %s31, %s870
          %s872 = smul.addr %s871, 128
          %s873 = scalar_lea.hbm %s7, %s872
          %s874 = sshll.u32 %s858, 4
          %s875 = int_to_ptr.vmem [resolvable:$true] %s874
          %880 = dma.vmem_to_hbm [thread:$0]  %s875, 256, %s873, %s855, 128, 128, 8
        $region52: #{tpu_custom_call.1} parent=47 // pred_fallthru
          _
        // Predicated region
        $region53: #{tpu_custom_call.1} parent=47 // pred_check
          %p881 = pneg %p254
        $region54: #{tpu_custom_call.1} parent=47 // pred_check_branch
          %883 = sbr.rel (%p881) target = $region56
        $region55: #{tpu_custom_call.1} parent=47 // pred_region
          %s885 = ssub.s32 256, 256
          %886 = vsyncadd %s860, %s885
          %s887 = smul.addr %s30, 2
          %s888 = sadd.s32 %s31, %s887
          %s889 = smul.addr %s888, 128
          %s890 = scalar_lea.hbm %s8, %s889
          %s891 = sshll.u32 %s863, 4
          %s892 = int_to_ptr.vmem [resolvable:$true] %s891
          %897 = dma.vmem_to_hbm [thread:$0]  %s892, 256, %s890, %s860, 128, 128, 8
        $region56: #{tpu_custom_call.1} parent=47 // pred_fallthru
          _
      $region48: #{tpu_custom_call.1} parent=5 // pred_fallthru
        _
      %p898 = scmp.le.s32.totalorder 2, %s21
      // Predicated region
      $region57: #{tpu_custom_call.1} parent=5 // pred_check
        %p899 = pneg %p898
      $region58: #{tpu_custom_call.1} parent=5 // pred_check_branch
        %901 = sbr.rel (%p899) target = $region60
      $region59: #{tpu_custom_call.1} parent=5 // pred_region
        %s902 = ssub.s32 %s21, 2
        // Predicated region
        $region61: #{tpu_custom_call.1} parent=59 // pred_check
          %p903 = pneg %p232
        $region62: #{tpu_custom_call.1} parent=59 // pred_check_branch
          %905 = sbr.rel (%p903) target = $region64
        $region63: #{tpu_custom_call.1} parent=59 // pred_region
          %s906 = sand.u32 %s217, 1
          %s907 = scalar_lea.sflag [#allocation4], %s906
          %s908 = sand.u32 %s217, 1
          %s909 = smul.addr %s908, 16
          %s910 = scalar_lea.vmem [#allocation3], %s909
          %911 = dma.done %s907, 256
        $region64: #{tpu_custom_call.1} parent=59 // pred_fallthru
          _
        // Predicated region
        $region65: #{tpu_custom_call.1} parent=59 // pred_check
          %p912 = pneg %p260
        $region66: #{tpu_custom_call.1} parent=59 // pred_check_branch
          %914 = sbr.rel (%p912) target = $region68
        $region67: #{tpu_custom_call.1} parent=59 // pred_region
          %s915 = sand.u32 %s245, 1
          %s916 = scalar_lea.sflag [#allocation6], %s915
          %s917 = sand.u32 %s245, 1
          %s918 = smul.addr %s917, 16
          %s919 = scalar_lea.vmem [#allocation5], %s918
          %920 = dma.done %s916, 256
        $region68: #{tpu_custom_call.1} parent=59 // pred_fallthru
          _
      $region60: #{tpu_custom_call.1} parent=5 // pred_fallthru
        _
    $region6: #{tpu_custom_call.1} parent=1 // loop_footer
      %s25 = sadd.s32 1, %s21
    $region7: #{tpu_custom_call.1} parent=1 // loop_footer_branch
      %20 = sbr.rel target = $region3
    $region8: #{tpu_custom_call.1} parent=1 // loop_exit
      _
    %921 = vsyncpa [#allocation4], 1
    %s922 = scalar_lea.sflag [#allocation4], 1
    %923 = vsyncpa %s922, 1
    %924 = vsyncpa [#allocation6], 1
    %s925 = scalar_lea.sflag [#allocation6], 1
    %926 = vsyncpa %s925, 1

</llo_original>
